<compile_context>
chip_gen: v5e
topology: v5e:2x2
jax: 0.10.0
libtpu: 0.0.40
codegen_flags: <defaults>
</compile_context>

<pallas_src>
import functools

import jax
import jax.numpy as jnp
from jax import lax
from jax.experimental import pallas as pl
from jax.experimental.pallas import tpu as pltpu


def _round_up(x, m):
    return (x + m - 1) // m * m


def gcn_kernel(a_ref, x_ref, norm_in_ref, o_ref, *, x_resident, tile_k, feat_dim):
    """One (dst-tile, src-tile) step of  out = D_in^-1/2 · A · (D_out^-1/2 · X)."""
    # a_ref:       (TM, TK)        bf16 adjacency tile (dst rows x src cols)
    # x_ref:       (NK or TK, 2D)  bf16 [x_hi ‖ x_lo], out-degree norm pre-folded
    # norm_in_ref: (TM, 1)         f32 in-degree^-0.5 of the destination rows
    # o_ref:       (TM, D)         f32 output tile, accumulated across the K axis
    k = pl.program_id(1)

    @pl.when(k == 0)
    def _():
        o_ref[...] = jnp.zeros_like(o_ref)

    if x_resident:
        start = pl.multiple_of(k * tile_k, tile_k)
        x = x_ref[pl.ds(start, tile_k), :]
    else:
        x = x_ref[...]

    # Single wide bf16 dot per step (RHS width 2D fills the 256-wide MXU on
    # v6e/v7x); hi and lo halves are recombined in f32 -> ~f32 accuracy.
    ps = jnp.dot(a_ref[...], x, preferred_element_type=jnp.float32)  # (TM, 2D)
    o_ref[...] += ps[:, :feat_dim] + ps[:, feat_dim:]

    @pl.when(k == pl.num_programs(1) - 1)
    def _():
        o_ref[...] *= norm_in_ref[...]


def gcn_layer(adj, u_f, v_f, *, tile_m=None, tile_k=None,
              resident_x_budget_bytes=8 * 1024 * 1024):
    """adj: (N, N) dense 0/1 adjacency, adj[dst, src] = 1. u_f: (Nu, D), v_f: (Nv, D)."""
    node_f = jnp.concatenate([u_f, v_f], axis=0).astype(jnp.float32)   # (N, D)
    # TODO(synk): stochastic dropout (feat_drop > 0, training mode) not implemented;
    # eval / p=0 semantics (identity) are reproduced.
    N, D = node_f.shape
    assert adj.shape == (N, N)

    # Both degrees in one wrapper pass over adj (XLA fuses the two reductions).
    adj_f32 = adj.astype(jnp.float32)
    out_deg = jnp.maximum(adj_f32.sum(axis=0), 1.0)
    in_deg = jnp.maximum(adj_f32.sum(axis=1), 1.0)
    norm_in = (in_deg ** -0.5).astype(jnp.float32)[:, None]            # (N, 1)

    # Fold D_out^-1/2 into the features once (N*D work, not per A tile).
    node_f = node_f * (out_deg ** -0.5)[:, None]

    # hi/lo split -> bf16 MXU operands at ~f32 accuracy; concatenated on the
    # lane axis so the kernel issues one (TK, 2D)-wide dot per step.
    x_hi = node_f.astype(jnp.bfloat16)
    x_lo = (node_f - x_hi.astype(jnp.float32)).astype(jnp.bfloat16)
    x_hilo = jnp.concatenate([x_hi, x_lo], axis=1)                     # (N, 2D) bf16

    # 0/1 adjacency is exact in bf16 (a weighted adjacency would lose bits).
    # The cast amortizes because GCN layers reuse the same graph; one-shot
    # callers on an HBM-bound chip can pass a pre-cast bf16 adj to skip it.
    adj_bf = adj if adj.dtype == jnp.bfloat16 else adj.astype(jnp.bfloat16)

    # ---- tile selection -----------------------------------------------------
    if tile_m is None:
        # Large tiles amortize the ~0.35 us per-grid-step overhead; keep >= 2
        # blocks on the 'parallel' M axis so both v7x TensorCores get work.
        tile_m = min(512, _round_up(max(pl.cdiv(N, 2), 8), 8))
    if tile_k is None:
        tile_k = min(2048, _round_up(N, 128))
    tile_m = _round_up(tile_m, 8)
    tile_k = _round_up(tile_k, 128)

    n_m = _round_up(N, tile_m)       # padded destination-node count
    n_k = _round_up(N, tile_k)       # padded source-node count

    # Zero padding is exact: padded sources never contribute, padded
    # destination rows are dropped at the end.
    if n_m != N or n_k != N:
        adj_bf = jnp.pad(adj_bf, ((0, n_m - N), (0, n_k - N)))
    if n_k != N:
        x_hilo = jnp.pad(x_hilo, ((0, n_k - N), (0, 0)))
    if n_m != N:
        norm_in = jnp.pad(norm_in, ((0, n_m - N), (0, 0)))

    # Keep the whole feature matrix VMEM-resident when it fits (read once from
    # HBM, no (N/tile_m)-fold re-read); otherwise stream (tile_k, 2D) tiles.
    x_bytes = x_hilo.size * 2                                  # bf16 -> 2 B/elem
    x_resident = x_bytes <= resident_x_budget_bytes
    if x_resident:
        x_spec = pl.BlockSpec((n_k, 2 * D), lambda i, k: (0, 0))
    else:
        x_spec = pl.BlockSpec((tile_k, 2 * D), lambda i, k: (k, 0))

    grid = (n_m // tile_m, n_k // tile_k)

    # Footprint-derived VMEM limit (+headroom), capped well below the 64 MiB
    # physical per-core VMEM of v7x.
    vmem_bytes = (2 * tile_m * tile_k * 2                      # A tiles, double-buffered
                  + x_bytes * (1 if x_resident else 2)         # features
                  + 2 * tile_m * D * 4                         # resident output tile
                  + 2 * tile_m * 4)                            # norm_in
    vmem_limit = int(min(max(2 * vmem_bytes + (4 << 20), 16 << 20), 48 << 20))

    kernel = functools.partial(gcn_kernel, x_resident=x_resident,
                               tile_k=tile_k, feat_dim=D)

    out = pl.pallas_call(
        kernel,
        out_shape=jax.ShapeDtypeStruct((n_m, D), jnp.float32),
        grid_spec=pltpu.PrefetchScalarGridSpec(
            num_scalar_prefetch=0,
            grid=grid,
            in_specs=[
                pl.BlockSpec((tile_m, tile_k), lambda i, k: (i, k)),   # A tile
                x_spec,                                                # features
                pl.BlockSpec((tile_m, 1), lambda i, k: (i, 0)),        # in-deg norm
            ],
            out_specs=pl.BlockSpec((tile_m, D), lambda i, k: (i, 0)),
        ),
        compiler_params=pltpu.CompilerParams(
            dimension_semantics=("parallel", "arbitrary"),
            vmem_limit_bytes=vmem_limit,
        ),
    )(adj_bf, x_hilo, norm_in)

    return out[:N] if n_m != N else out


def gcn_reference(adj, u_f, v_f):
    node_f = jnp.concatenate([u_f, v_f], axis=0)
    out_deg = jnp.maximum(adj.sum(axis=0), 1.0)
    in_deg = jnp.maximum(adj.sum(axis=1), 1.0)
    node_f = node_f * (out_deg ** -0.5)[:, None]
    rst = jnp.dot(adj, node_f, precision=lax.Precision.HIGHEST)
    return rst * (in_deg ** -0.5)[:, None]


if __name__ == "__main__":
    key = jax.random.PRNGKey(0)
    k_u, k_v, k_a = jax.random.split(key, 3)

    num_u, num_v, feat_dim = 64, 64, 128
    num_nodes = num_u + num_v

    u_f = jax.random.normal(k_u, (num_u, feat_dim), dtype=jnp.float32)
    v_f = jax.random.normal(k_v, (num_v, feat_dim), dtype=jnp.float32)
    # Deterministic synthetic graph: A[dst, src] in {0, 1}.
    adj = jax.random.bernoulli(
        k_a, p=0.1, shape=(num_nodes, num_nodes)).astype(jnp.float32)

    rst = jax.block_until_ready(gcn_layer(adj, u_f, v_f))
    ref = gcn_reference(adj, u_f, v_f)

    assert rst.shape == (num_nodes, feat_dim)
    assert jnp.allclose(rst, ref, atol=1e-4, rtol=1e-4), float(
        jnp.max(jnp.abs(rst - ref)))

    print("KERNEL_OK")
</pallas_src>

<mosaic_0001>
module attributes {stable_mosaic.version = 11 : i64} {
  func.func @gcn_kernel(%arg0: i32, %arg1: i32, %arg2: memref<64x128xbf16, #tpu.memory_space<vmem>>, %arg3: memref<128x256xbf16, #tpu.memory_space<vmem>>, %arg4: memref<64x1xf32, #tpu.memory_space<vmem>>, %arg5: memref<64x128xf32, #tpu.memory_space<vmem>>) attributes {dimension_semantics = [#tpu.dimension_semantics<parallel>, #tpu.dimension_semantics<arbitrary>], iteration_bounds = array<i64: 2, 1>, scalar_prefetch = 0 : i64, scratch_operands = 0 : i64, tpu.core_type = #tpu.core_type<tc>, window_params = [{transform_indices = @transform_0, window_bounds = array<i64: 64, 128>}, {pipeline_mode = #tpu.pipeline_mode<synchronous>, transform_indices = @transform_1, window_bounds = array<i64: 128, 256>}, {transform_indices = @transform_2, window_bounds = array<i64: 64, 1>}, {transform_indices = @transform_3, window_bounds = array<i64: 64, 128>}]} {
    %c0_i32 = arith.constant 0 : i32
    %0 = arith.cmpi eq, %arg1, %c0_i32 : i32
    %1 = arith.extui %0 : i1 to i32
    %c0_i32_0 = arith.constant 0 : i32
    %2 = arith.cmpi ne, %1, %c0_i32_0 : i32
    scf.if %2 {
      %cst_9 = arith.constant 0.000000e+00 : f32
      %18 = vector.broadcast %cst_9 : f32 to vector<64x128xf32>
      %c0_10 = arith.constant 0 : index
      %c0_11 = arith.constant 0 : index
      %19 = vector.load %arg5[%c0_10, %c0_11] : memref<64x128xf32, #tpu.memory_space<vmem>>, vector<64x128xf32>
      tpu.vector_store %arg5[%c0_10, %c0_11], %18 {strides = array<i32>} : memref<64x128xf32, #tpu.memory_space<vmem>>, vector<64x128xf32>,
    } else {
    }
    %c128_i32 = arith.constant 128 : i32
    %3 = arith.muli %arg1, %c128_i32 : i32
    %4 = tpu.assume_multiple %3, 128 : i32
    %5 = arith.index_cast %4 : i32 to index
    %c0 = arith.constant 0 : index
    %6 = vector.load %arg3[%5, %c0] : memref<128x256xbf16, #tpu.memory_space<vmem>>, vector<128x256xbf16>
    %c0_1 = arith.constant 0 : index
    %c0_2 = arith.constant 0 : index
    %7 = vector.load %arg2[%c0_1, %c0_2] : memref<64x128xbf16, #tpu.memory_space<vmem>>, vector<64x128xbf16>
    %cst = arith.constant dense<0.000000e+00> : vector<64x256xf32>
    %8 = tpu.matmul %7, %6, %cst {dimension_numbers = #tpu.dot_dimension_numbers<[1], [0], [0], [1], [0, 0, 1, 1], [], []>} : vector<64x128xbf16>, vector<128x256xbf16>, vector<64x256xf32> -> vector<64x256xf32>
    %c0_3 = arith.constant 0 : index
    %c0_4 = arith.constant 0 : index
    %9 = vector.load %arg5[%c0_3, %c0_4] : memref<64x128xf32, #tpu.memory_space<vmem>>, vector<64x128xf32>
    %10 = vector.extract_strided_slice %8 {offsets = [0, 0], sizes = [64, 128], strides = [1, 1]} : vector<64x256xf32> to vector<64x128xf32>
    %11 = vector.extract_strided_slice %8 {offsets = [0, 128], sizes = [64, 128], strides = [1, 1]} : vector<64x256xf32> to vector<64x128xf32>
    %12 = arith.addf %10, %11 : vector<64x128xf32>
    %13 = arith.addf %9, %12 : vector<64x128xf32>
    %c0_5 = arith.constant 0 : index
    %c0_6 = arith.constant 0 : index
    %14 = vector.load %arg5[%c0_5, %c0_6] : memref<64x128xf32, #tpu.memory_space<vmem>>, vector<64x128xf32>
    tpu.vector_store %arg5[%c0_5, %c0_6], %13 {strides = array<i32>} : memref<64x128xf32, #tpu.memory_space<vmem>>, vector<64x128xf32>,
    %c0_i32_7 = arith.constant 0 : i32
    %15 = arith.cmpi eq, %arg1, %c0_i32_7 : i32
    %16 = arith.extui %15 : i1 to i32
    %c0_i32_8 = arith.constant 0 : i32
    %17 = arith.cmpi ne, %16, %c0_i32_8 : i32
    scf.if %17 {
      %c0_9 = arith.constant 0 : index
      %c0_10 = arith.constant 0 : index
      %18 = vector.load %arg5[%c0_9, %c0_10] : memref<64x128xf32, #tpu.memory_space<vmem>>, vector<64x128xf32>
      %c0_11 = arith.constant 0 : index
      %c0_12 = arith.constant 0 : index
      %19 = vector.load %arg4[%c0_11, %c0_12] : memref<64x1xf32, #tpu.memory_space<vmem>>, vector<64x1xf32>
      %20 = vector.broadcast %19 : vector<64x1xf32> to vector<64x128xf32>
      %21 = arith.mulf %18, %20 : vector<64x128xf32>
      %c0_13 = arith.constant 0 : index
      %c0_14 = arith.constant 0 : index
      %22 = vector.load %arg5[%c0_13, %c0_14] : memref<64x128xf32, #tpu.memory_space<vmem>>, vector<64x128xf32>
      tpu.vector_store %arg5[%c0_13, %c0_14], %21 {strides = array<i32>} : memref<64x128xf32, #tpu.memory_space<vmem>>, vector<64x128xf32>,
    } else {
    }
    return
  }
  func.func @transform_0(%arg0: i32, %arg1: i32) -> (i32, i32) {
    %c0_i32 = arith.constant 0 : i32
    return %arg0, %arg1 : i32, i32
  }
  func.func @transform_1(%arg0: i32, %arg1: i32) -> (i32, i32) {
    %c0_i32 = arith.constant 0 : i32
    %c0_i32_0 = arith.constant 0 : i32
    %c0_i32_1 = arith.constant 0 : i32
    return %c0_i32, %c0_i32_0 : i32, i32
  }
  func.func @transform_2(%arg0: i32, %arg1: i32) -> (i32, i32) {
    %c0_i32 = arith.constant 0 : i32
    %c0_i32_0 = arith.constant 0 : i32
    return %arg0, %c0_i32 : i32, i32
  }
  func.func @transform_3(%arg0: i32, %arg1: i32) -> (i32, i32) {
    %c0_i32 = arith.constant 0 : i32
    %c0_i32_0 = arith.constant 0 : i32
    return %arg0, %c0_i32 : i32, i32
  }
}

</mosaic_0001>

<llo_original>
// kernel: tpu_custom_call.1
$region0: #{tpu_custom_call.1}
  #allocation0 [shape = 'u32[]', space=smem, size = 0x4, offset = 0x4, fixed_abs, tag = 'smem constant byte address 0x4 - core index']
  #allocation1 [shape = 'u32[72,128]{1,0:T(1,128)}', space=vmem, size = 0x9000, scoped, tag = 'internal scratch']
  %s0 = inlined_call_operand.hbm [shape: bf16[128,128], index: 0, kind: input, shape index: {}]
  %s1 = inlined_call_operand.vmem [shape: bf16[128,256], index: 1, kind: input, shape index: {}]
  %s2 = inlined_call_operand.vmem [shape: f32[128,1], index: 2, kind: input, shape index: {}]
  %s3 = inlined_call_operand.hbm [shape: f32[128,128], index: 3, kind: output, shape index: {}]
  %s4 = sld [smem:[#allocation0]]
  $region57: #{tpu_custom_call.1} parent=0
    _
  %s6 = ssub.s32 1, %s4
  %s7 = scalar_select 0, %s6, %s4
  $region1: #{tpu_custom_call.1} parent=0
    #allocation2 [shape = 'u8[32768]{0}', space=vmem, size = 0x8000, scoped, tag = 'input window, operand 0']
    #allocation3 [shape = 's32[2]{0}', space=sflag, size = 0x8, scoped, tag = 'scoped memory for tpu_custom_call.1']
    #allocation4 [shape = 's32[2]{0}', space=sflag, size = 0x8, scoped, tag = 'scoped memory for tpu_custom_call.1']
    #allocation5 [shape = 'u8[65536]{0}', space=vmem, size = 0x10000, scoped, tag = 'output window, operand 0']
    %8 = vsyncpa [#allocation3], 0
    %s9 = scalar_lea.sflag [#allocation3], 1
    %10 = vsyncpa %s9, 0
    %11 = vsyncpa [#allocation4], 0
    %s12 = scalar_lea.sflag [#allocation4], 1
    %13 = vsyncpa %s12, 0
    loop: start=0, step=1, limit=4
    $region2: #{tpu_custom_call.1} parent=1 // loop_pre_header
      _
    $region3: #{tpu_custom_call.1} parent=1 // loop_header
      %s15 = sphi 0, %s19
      %p16 = scmp.ge.s32.totalorder %s15, 4
      %s22 = sphi 0, %s34
      %s23 = sphi 0, %s30
      %s24 = sphi 0, %s22
      %s25 = sphi 0, %s23
      %s26 = sphi 0, %s24
      %s27 = sphi 0, %s25
      %s39 = sphi 0, %s41
      %s42 = sphi 0, %s39
      %s43 = sphi 0, %s42
      %s59 = sphi 0, %s43
      %s63 = sphi 0, %s63
      %s65 = sphi 0, %s63
      %s66 = sphi 0, %s65
      %s80 = sphi 0, %s66
      %s86 = sphi 0, %s88
      %s89 = sphi 0, %s86
      %s90 = sphi 0, %s89
      %s106 = sphi 0, %s90
      %s112 = sphi 0, %s114
      %s115 = sphi 0, %s112
      %s116 = sphi 0, %s115
      %s132 = sphi 0, %s116
    $region4: #{tpu_custom_call.1} parent=1 // loop_header_branch
      %18 = sbr.rel (%p16) target = $region8
    $region5: #{tpu_custom_call.1} parent=1 // loop_body
      %s20 = ssub.s32 %s15, 1
      %s21 = ssub.s32 %s15, 2
      %s28 = sadd.s32 1, %s23
      %p29 = scmp.ge.s32.totalorder %s28, 1
      %s30 = scalar_select %p29, 0, %s28
      %s31 = sadd.s32 1, %s22
      %s32 = scalar_select %p29, %s31, %s22
      %p33 = scmp.ge.s32.totalorder %s32, 2
      %s34 = scalar_select %p33, 0, %s32
      %s35 = ssub.s32 %s22, %s34
      %s36 = ssub.s32 %s23, %s30
      %s37 = sor.u32 %s35, %s36
      %p38 = scmp.eq.s32.totalorder %s37, 0
      %s40 = sadd.s32 %s39, 1
      %s41 = scalar_select %p38, %s39, %s40
      %p44 = pneg %p38
      %p45 = scmp.eq.s32.totalorder %s15, 1
      %p46 = por %p44, %p45
      %p47 = scmp.ne.s32.totalorder %s39, %s42
      %p48 = scmp.eq.s32.totalorder %s15, 0
      %p49 = por %p47, %p48
      %p50 = scmp.ne.s32.totalorder %s39, %s42
      %p51 = scmp.eq.s32.totalorder %s20, 1
      %p52 = por %p50, %p51
      %p53 = scmp.ne.s32.totalorder %s42, %s43
      %p54 = scmp.eq.s32.totalorder %s20, 0
      %p55 = por %p53, %p54
      %p56 = scmp.ne.s32.totalorder %s42, %s43
      %p57 = scmp.eq.s32.totalorder %s21, 1
      %p58 = por %p56, %p57
      %p60 = scmp.ne.s32.totalorder %s43, %s59
      %p61 = scmp.eq.s32.totalorder %s21, 0
      %p62 = por %p60, %p61
      %s64 = sadd.s32 %s63, 1
      %p67 = scmp.eq.s32.totalorder %s15, 1
      %p68 = scmp.ne.s32.totalorder %s63, %s65
      %p69 = scmp.eq.s32.totalorder %s15, 0
      %p70 = por %p68, %p69
      %p71 = scmp.ne.s32.totalorder %s63, %s65
      %p72 = scmp.eq.s32.totalorder %s20, 1
      %p73 = por %p71, %p72
      %p74 = scmp.ne.s32.totalorder %s65, %s66
      %p75 = scmp.eq.s32.totalorder %s20, 0
      %p76 = por %p74, %p75
      %p77 = scmp.ne.s32.totalorder %s65, %s66
      %p78 = scmp.eq.s32.totalorder %s21, 1
      %p79 = por %p77, %p78
      %p81 = scmp.ne.s32.totalorder %s66, %s80
      %p82 = scmp.eq.s32.totalorder %s21, 0
      %p83 = por %p81, %p82
      %s84 = ssub.s32 %s22, %s34
      %p85 = scmp.eq.s32.totalorder %s84, 0
      %s87 = sadd.s32 %s86, 1
      %s88 = scalar_select %p85, %s86, %s87
      %p91 = pneg %p85
      %p92 = scmp.eq.s32.totalorder %s15, 1
      %p93 = por %p91, %p92
      %p94 = scmp.ne.s32.totalorder %s86, %s89
      %p95 = scmp.eq.s32.totalorder %s15, 0
      %p96 = por %p94, %p95
      %p97 = scmp.ne.s32.totalorder %s86, %s89
      %p98 = scmp.eq.s32.totalorder %s20, 1
      %p99 = por %p97, %p98
      %p100 = scmp.ne.s32.totalorder %s89, %s90
      %p101 = scmp.eq.s32.totalorder %s20, 0
      %p102 = por %p100, %p101
      %p103 = scmp.ne.s32.totalorder %s89, %s90
      %p104 = scmp.eq.s32.totalorder %s21, 1
      %p105 = por %p103, %p104
      %p107 = scmp.ne.s32.totalorder %s90, %s106
      %p108 = scmp.eq.s32.totalorder %s21, 0
      %p109 = por %p107, %p108
      %s110 = ssub.s32 %s22, %s34
      %p111 = scmp.eq.s32.totalorder %s110, 0
      %s113 = sadd.s32 %s112, 1
      %s114 = scalar_select %p111, %s112, %s113
      %p117 = pneg %p111
      %p118 = scmp.eq.s32.totalorder %s15, 1
      %p119 = por %p117, %p118
      %p120 = scmp.ne.s32.totalorder %s112, %s115
      %p121 = scmp.eq.s32.totalorder %s15, 0
      %p122 = por %p120, %p121
      %p123 = scmp.ne.s32.totalorder %s112, %s115
      %p124 = scmp.eq.s32.totalorder %s20, 1
      %p125 = por %p123, %p124
      %p126 = scmp.ne.s32.totalorder %s115, %s116
      %p127 = scmp.eq.s32.totalorder %s20, 0
      %p128 = por %p126, %p127
      %p129 = scmp.ne.s32.totalorder %s115, %s116
      %p130 = scmp.eq.s32.totalorder %s21, 1
      %p131 = por %p129, %p130
      %p133 = scmp.ne.s32.totalorder %s116, %s132
      %p134 = scmp.eq.s32.totalorder %s21, 0
      %p135 = por %p133, %p134
      %p136 = scmp.le.s32.totalorder 1, %s15
      %p137 = scmp.lt.s32.totalorder %s15, 3
      %p138 = pnand %p136, %p137
      %p139 = pneg %p138
      // Predicated region
      $region9: #{tpu_custom_call.1} parent=5 // pred_check
        _
      $region10: #{tpu_custom_call.1} parent=5 // pred_check_branch
        %141 = sbr.rel (%p138) target = $region12
      $region11: #{tpu_custom_call.1} parent=5 // pred_region
        %s142 = ssub.s32 %s15, 1
        // Predicated region
        $region13: #{tpu_custom_call.1} parent=11 // pred_check
          %p143 = pneg %p76
        $region14: #{tpu_custom_call.1} parent=11 // pred_check_branch
          %145 = sbr.rel (%p143) target = $region16
        $region15: #{tpu_custom_call.1} parent=11 // pred_region
          _
        $region16: #{tpu_custom_call.1} parent=11 // pred_fallthru
          _
      $region12: #{tpu_custom_call.1} parent=5 // pred_fallthru
        _
      %p146 = scmp.lt.s32.totalorder %s15, 2
      // Predicated region
      $region17: #{tpu_custom_call.1} parent=5 // pred_check
        %p147 = pneg %p146
      $region18: #{tpu_custom_call.1} parent=5 // pred_check_branch
        %149 = sbr.rel (%p147) target = $region20
      $region19: #{tpu_custom_call.1} parent=5 // pred_region
        // Predicated region
        $region21: #{tpu_custom_call.1} parent=19 // pred_check
          %p150 = pneg %p49
        $region22: #{tpu_custom_call.1} parent=19 // pred_check_branch
          %152 = sbr.rel (%p150) target = $region24
        $region23: #{tpu_custom_call.1} parent=19 // pred_region
          %s153 = sand.u32 %s39, 1
          %s154 = scalar_lea.sflag [#allocation3], %s153
          %s155 = sand.u32 %s39, 1
          %s156 = smul.addr %s155, 32
          %s157 = scalar_lea.vmem [#allocation2], %s156
          %s158 = smul.u32 8, %s22
          %160 = vsyncadd %s154, 0
          %s161 = sadd.s32 %s23, %s158
          %s162 = smul.addr %s161, 4
          %s163 = scalar_lea.hbm %s0, %s162
          %s164 = sshll.u32 %s163, 4
          %s165 = int_to_ptr.hbm [resolvable:$true] %s164
          %s166 = sshll.u32 %s157, 4
          %s167 = int_to_ptr.vmem [resolvable:$true] %s166
          %172 = dma.hbm_to_vmem [thread:$0]  %s165, 512, %s167, %s154, 64, 64, 4
        $region24: #{tpu_custom_call.1} parent=19 // pred_fallthru
          _
        // Predicated region
        $region25: #{tpu_custom_call.1} parent=19 // pred_check
          %p173 = pneg %p96
        $region26: #{tpu_custom_call.1} parent=19 // pred_check_branch
          %175 = sbr.rel (%p173) target = $region28
        $region27: #{tpu_custom_call.1} parent=19 // pred_region
          %s176 = smul.u32 8, %s22
          %p177 = scmp.lt.s32.totalorder %s176, 15
          %s178 = scalar_select %p177, %s176, 15
          %s179 = smul.addr %s178, 8
          %s180 = scalar_lea.vmem %s2, %s179
          %s181 = smul.u32 8, %s22
        $region28: #{tpu_custom_call.1} parent=19 // pred_fallthru
          _
      $region20: #{tpu_custom_call.1} parent=5 // pred_fallthru
        _
      %p182 = scmp.le.s32.totalorder 1, %s15
      %p183 = scmp.lt.s32.totalorder %s15, 3
      %p184 = pnand %p182, %p183
      %p185 = pneg %p184
      // Predicated region
      $region29: #{tpu_custom_call.1} parent=5 // pred_check
        _
      $region30: #{tpu_custom_call.1} parent=5 // pred_check_branch
        %187 = sbr.rel (%p184) target = $region32
      $region31: #{tpu_custom_call.1} parent=5 // pred_region
        %s188 = ssub.s32 %s15, 1
        %s189 = sand.u32 %s42, 1
        %s190 = scalar_lea.sflag [#allocation3], %s189
        %s191 = sand.u32 %s42, 1
        %s192 = smul.addr %s191, 32
        %s193 = scalar_lea.vmem [#allocation2], %s192
        // Predicated region
        $region33: #{tpu_custom_call.1} parent=31 // pred_check
          %p194 = pneg %p55
        $region34: #{tpu_custom_call.1} parent=31 // pred_check_branch
          %196 = sbr.rel (%p194) target = $region36
        $region35: #{tpu_custom_call.1} parent=31 // pred_region
          %198 = dma.done %s190, 512
        $region36: #{tpu_custom_call.1} parent=31 // pred_fallthru
          _
        %s199 = sand.u32 %s42, 1
        %s200 = scalar_lea.sflag [#allocation3], %s199
        %s201 = sand.u32 %s42, 1
        %s202 = smul.addr %s201, 32
        %s203 = scalar_lea.vmem [#allocation2], %s202
        %p204 = pneg %p55
        %p205 = pneg %p52
        %p206 = pneg %p76
        %p207 = pneg %p73
        %s208 = smul.u32 8, %s24
        %p209 = scmp.lt.s32.totalorder %s208, 15
        %s210 = scalar_select %p209, %s208, 15
        %s211 = smul.addr %s210, 8
        %s212 = scalar_lea.vmem %s2, %s211
        %p213 = pneg %p102
        %p214 = pneg %p99
        %p215 = pneg %p128
        %p216 = pneg %p125
        %s217 = sand.u32 %s115, 1
        %s218 = scalar_lea.sflag [#allocation4], %s217
        %s219 = sand.u32 %s115, 1
        %s220 = smul.addr %s219, 64
        %s221 = scalar_lea.vmem [#allocation5], %s220
        %s222 = smul.u32 8, %s24
        %s223 = smul.u32 8, %s24
        %p224 = scmp.lt.s32.totalorder %s223, 15
        %s225 = scalar_select %p224, %s223, 15
        %s226 = smul.addr %s225, 8
        %s227 = scalar_lea.vmem %s2, %s226
        %s228 = smul.u32 8, %s24
        %s229 = smul.u32 8, %s24
        %p230 = scmp.eq.s32.totalorder %s25, 0
        // Predicated region
        $region37: #{tpu_custom_call.1} parent=31 // pred_check
          %p231 = pneg %p230
        $region38: #{tpu_custom_call.1} parent=31 // pred_check_branch
          %233 = sbr.rel (%p231) target = $region40
        $region39: #{tpu_custom_call.1} parent=31 // pred_region
          %234 = vst [vmem:[%s221] sm:$0xff] 0.0
          %235 = vst [vmem:[%s221 + $0x8] sm:$0xff] 0.0
          %236 = vst [vmem:[%s221 + $0x10] sm:$0xff] 0.0
          %237 = vst [vmem:[%s221 + $0x18] sm:$0xff] 0.0
          %238 = vst [vmem:[%s221 + $0x20] sm:$0xff] 0.0
          %239 = vst [vmem:[%s221 + $0x28] sm:$0xff] 0.0
          %240 = vst [vmem:[%s221 + $0x30] sm:$0xff] 0.0
          %241 = vst [vmem:[%s221 + $0x38] sm:$0xff] 0.0
        $region40: #{tpu_custom_call.1} parent=31 // pred_fallthru
          _
        %s242 = smul.u32 %s25, 128
        %s243 = sshra.s32 %s242, 3
        %s244 = sand.u32 %s242, 7
        %s245 = smul.u32 %s243, 2
        %s246 = smul.addr %s245, 4
        %s247 = scalar_lea.vmem %s1, %s246
        %v248 = vld [vmem:[%s247] sm:$0xff]
        %v249 = vld [vmem:[%s247 + $0x8] sm:$0xff]
        %v250 = vld [vmem:[%s247 + $0x10] sm:$0xff]
        %v251 = vld [vmem:[%s247 + $0x18] sm:$0xff]
        %v252 = vld [vmem:[%s247 + $0x20] sm:$0xff]
        %v253 = vld [vmem:[%s247 + $0x28] sm:$0xff]
        %v254 = vld [vmem:[%s247 + $0x30] sm:$0xff]
        %v255 = vld [vmem:[%s247 + $0x38] sm:$0xff]
        %v256 = vld [vmem:[%s247 + $0x40] sm:$0xff]
        %v257 = vld [vmem:[%s247 + $0x48] sm:$0xff]
        %v258 = vld [vmem:[%s247 + $0x50] sm:$0xff]
        %v259 = vld [vmem:[%s247 + $0x58] sm:$0xff]
        %v260 = vld [vmem:[%s247 + $0x60] sm:$0xff]
        %v261 = vld [vmem:[%s247 + $0x68] sm:$0xff]
        %v262 = vld [vmem:[%s247 + $0x70] sm:$0xff]
        %v263 = vld [vmem:[%s247 + $0x78] sm:$0xff]
        %v264 = vld [vmem:[%s193] sm:$0xf]
        %v265 = vld [vmem:[%s193 + $0x4] sm:$0xf]
        %v266 = vld [vmem:[%s193 + $0x8] sm:$0xf]
        %v267 = vld [vmem:[%s193 + $0xc] sm:$0xf]
        %v268 = vld [vmem:[%s193 + $0x10] sm:$0xf]
        %v269 = vld [vmem:[%s193 + $0x14] sm:$0xf]
        %v270 = vld [vmem:[%s193 + $0x18] sm:$0xf]
        %v271 = vld [vmem:[%s193 + $0x1c] sm:$0xf]
        %v280 = vunpack.c.l.b16 %v264
        %v281 = vunpack.c.l.b16 %v265
        %v282 = vunpack.c.l.b16 %v266
        %v283 = vunpack.c.l.b16 %v267
        %v284 = vunpack.c.l.b16 %v268
        %v285 = vunpack.c.l.b16 %v269
        %v286 = vunpack.c.l.b16 %v270
        %v287 = vunpack.c.l.b16 %v271
        %v288 = vpack.c.b16 %v281, %v280
        %v289 = vpack.c.b16 %v283, %v282
        %v290 = vpack.c.b16 %v285, %v284
        %v291 = vpack.c.b16 %v287, %v286
        %v312 = vunpack.c.l.b16 %v248
        %v313 = vunpack.c.h.b16 %v248
        %v314 = vunpack.c.l.b16 %v249
        %v315 = vunpack.c.h.b16 %v249
        %v316 = vunpack.c.l.b16 %v250
        %v317 = vunpack.c.h.b16 %v250
        %v318 = vunpack.c.l.b16 %v251
        %v319 = vunpack.c.h.b16 %v251
        %v320 = vunpack.c.l.b16 %v252
        %v321 = vunpack.c.h.b16 %v252
        %v322 = vunpack.c.l.b16 %v253
        %v323 = vunpack.c.h.b16 %v253
        %v324 = vunpack.c.l.b16 %v254
        %v325 = vunpack.c.h.b16 %v254
        %v326 = vunpack.c.l.b16 %v255
        %v327 = vunpack.c.h.b16 %v255
        %v328 = vunpack.c.l.b16 %v256
        %v329 = vunpack.c.h.b16 %v256
        %v330 = vunpack.c.l.b16 %v257
        %v331 = vunpack.c.h.b16 %v257
        %v332 = vunpack.c.l.b16 %v258
        %v333 = vunpack.c.h.b16 %v258
        %v334 = vunpack.c.l.b16 %v259
        %v335 = vunpack.c.h.b16 %v259
        %v336 = vunpack.c.l.b16 %v260
        %v337 = vunpack.c.h.b16 %v260
        %v338 = vunpack.c.l.b16 %v261
        %v339 = vunpack.c.h.b16 %v261
        %v340 = vunpack.c.l.b16 %v262
        %v341 = vunpack.c.h.b16 %v262
        %v342 = vunpack.c.l.b16 %v263
        %v343 = vunpack.c.h.b16 %v263
        %v344 = vpack.c.b16 %v314, %v312
        %v345 = vpack.c.b16 %v315, %v313
        %v346 = vpack.c.b16 %v318, %v316
        %v347 = vpack.c.b16 %v319, %v317
        %v348 = vpack.c.b16 %v322, %v320
        %v349 = vpack.c.b16 %v323, %v321
        %v350 = vpack.c.b16 %v326, %v324
        %v351 = vpack.c.b16 %v327, %v325
        %v352 = vpack.c.b16 %v330, %v328
        %v353 = vpack.c.b16 %v331, %v329
        %v354 = vpack.c.b16 %v334, %v332
        %v355 = vpack.c.b16 %v335, %v333
        %v356 = vpack.c.b16 %v338, %v336
        %v357 = vpack.c.b16 %v339, %v337
        %v358 = vpack.c.b16 %v342, %v340
        %v359 = vpack.c.b16 %v343, %v341
        %376 = vmatpush.bf16.msra.mxu0 %v358
        %377 = vmatpush.bf16.msra.mxu0 %v356
        %378 = vmatpush.bf16.msra.mxu0 %v354
        %379 = vmatpush.bf16.msra.mxu0 %v352
        %380 = vmatpush.bf16.msra.mxu0 %v350
        %381 = vmatpush.bf16.msra.mxu0 %v348
        %382 = vmatpush.bf16.msra.mxu0 %v346
        %383 = vmatpush.bf16.msra.mxu0 %v344
        %384 = vmatmul.bf16.gmra.mxu0 %v288
        %v385 = vpop.f32.mrf.mxu0
        %v386 = vadd.f32 0.0, %v385
        %v387 = vpop.f32.mrf.mxu0
        %v388 = vadd.f32 0.0, %v387
        %389 = vmatmul.bf16.gmra.mxu0 %v289
        %v390 = vpop.f32.mrf.mxu0
        %v391 = vadd.f32 0.0, %v390
        %v392 = vpop.f32.mrf.mxu0
        %v393 = vadd.f32 0.0, %v392
        %394 = vmatmul.bf16.gmra.mxu0 %v290
        %v395 = vpop.f32.mrf.mxu0
        %v396 = vadd.f32 0.0, %v395
        %v397 = vpop.f32.mrf.mxu0
        %v398 = vadd.f32 0.0, %v397
        %399 = vmatmul.bf16.gmra.mxu0 %v291
        %v400 = vpop.f32.mrf.mxu0
        %v401 = vadd.f32 0.0, %v400
        %v402 = vpop.f32.mrf.mxu0
        %v403 = vadd.f32 0.0, %v402
        %404 = vdwg.mxu0
        %405 = vmatpush.bf16.msra.mxu0 %v359
        %406 = vmatpush.bf16.msra.mxu0 %v357
        %407 = vmatpush.bf16.msra.mxu0 %v355
        %408 = vmatpush.bf16.msra.mxu0 %v353
        %409 = vmatpush.bf16.msra.mxu0 %v351
        %410 = vmatpush.bf16.msra.mxu0 %v349
        %411 = vmatpush.bf16.msra.mxu0 %v347
        %412 = vmatpush.bf16.msra.mxu0 %v345
        %413 = vmatmul.bf16.gmra.mxu0 %v288
        %v414 = vpop.f32.mrf.mxu0
        %v415 = vadd.f32 0.0, %v414
        %v416 = vpop.f32.mrf.mxu0
        %v417 = vadd.f32 0.0, %v416
        %418 = vmatmul.bf16.gmra.mxu0 %v289
        %v419 = vpop.f32.mrf.mxu0
        %v420 = vadd.f32 0.0, %v419
        %v421 = vpop.f32.mrf.mxu0
        %v422 = vadd.f32 0.0, %v421
        %423 = vmatmul.bf16.gmra.mxu0 %v290
        %v424 = vpop.f32.mrf.mxu0
        %v425 = vadd.f32 0.0, %v424
        %v426 = vpop.f32.mrf.mxu0
        %v427 = vadd.f32 0.0, %v426
        %428 = vmatmul.bf16.gmra.mxu0 %v291
        %v429 = vpop.f32.mrf.mxu0
        %v430 = vadd.f32 0.0, %v429
        %v431 = vpop.f32.mrf.mxu0
        %v432 = vadd.f32 0.0, %v431
        %433 = vdwg.mxu0
        %v434 = vld [vmem:[%s221] sm:$0xff]
        %v435 = vld [vmem:[%s221 + $0x8] sm:$0xff]
        %v436 = vld [vmem:[%s221 + $0x10] sm:$0xff]
        %v437 = vld [vmem:[%s221 + $0x18] sm:$0xff]
        %v438 = vld [vmem:[%s221 + $0x20] sm:$0xff]
        %v439 = vld [vmem:[%s221 + $0x28] sm:$0xff]
        %v440 = vld [vmem:[%s221 + $0x30] sm:$0xff]
        %v441 = vld [vmem:[%s221 + $0x38] sm:$0xff]
        %v442 = vadd.f32 %v386, %v415
        %v443 = vadd.f32 %v388, %v417
        %v444 = vadd.f32 %v391, %v420
        %v445 = vadd.f32 %v393, %v422
        %v446 = vadd.f32 %v396, %v425
        %v447 = vadd.f32 %v398, %v427
        %v448 = vadd.f32 %v401, %v430
        %v449 = vadd.f32 %v403, %v432
        %v450 = vadd.f32 %v434, %v442
        %v451 = vadd.f32 %v435, %v443
        %v452 = vadd.f32 %v436, %v444
        %v453 = vadd.f32 %v437, %v445
        %v454 = vadd.f32 %v438, %v446
        %v455 = vadd.f32 %v439, %v447
        %v456 = vadd.f32 %v440, %v448
        %v457 = vadd.f32 %v441, %v449
        %458 = vst [vmem:[%s221] sm:$0xff] %v450
        %459 = vst [vmem:[%s221 + $0x8] sm:$0xff] %v451
        %460 = vst [vmem:[%s221 + $0x10] sm:$0xff] %v452
        %461 = vst [vmem:[%s221 + $0x18] sm:$0xff] %v453
        %462 = vst [vmem:[%s221 + $0x20] sm:$0xff] %v454
        %463 = vst [vmem:[%s221 + $0x28] sm:$0xff] %v455
        %464 = vst [vmem:[%s221 + $0x30] sm:$0xff] %v456
        %465 = vst [vmem:[%s221 + $0x38] sm:$0xff] %v457
        // Predicated region
        $region41: #{tpu_custom_call.1} parent=31 // pred_check
          %p466 = pneg %p230
        $region42: #{tpu_custom_call.1} parent=31 // pred_check_branch
          %468 = sbr.rel (%p466) target = $region44
        $region43: #{tpu_custom_call.1} parent=31 // pred_region
          %v469 = vld [vmem:[%s221] sm:$0xff]
          %v470 = vld [vmem:[%s221 + $0x8] sm:$0xff]
          %v471 = vld [vmem:[%s221 + $0x10] sm:$0xff]
          %v472 = vld [vmem:[%s221 + $0x18] sm:$0xff]
          %v473 = vld [vmem:[%s221 + $0x20] sm:$0xff]
          %v474 = vld [vmem:[%s221 + $0x28] sm:$0xff]
          %v475 = vld [vmem:[%s221 + $0x30] sm:$0xff]
          %v476 = vld [vmem:[%s221 + $0x38] sm:$0xff]
          %v477 = vld [vmem:[%s227] sm:$0xff]
          %v478 = vld [vmem:[%s227 + $0x8] sm:$0xff]
          %v479 = vld [vmem:[%s227 + $0x10] sm:$0xff]
          %v480 = vld [vmem:[%s227 + $0x18] sm:$0xff]
          %v481 = vld [vmem:[%s227 + $0x20] sm:$0xff]
          %v482 = vld [vmem:[%s227 + $0x28] sm:$0xff]
          %v483 = vld [vmem:[%s227 + $0x30] sm:$0xff]
          %v484 = vld [vmem:[%s227 + $0x38] sm:$0xff]
          %486 = vset.pattern.permute.xlu0 0
          %487 = vperm.xlu0 %486, %v477
          %v488 = vpop.permute.xlu0 %487
          %491 = vset.pattern.permute.xlu0 0
          %492 = vperm.xlu0 %491, %v478
          %v493 = vpop.permute.xlu0 %492
          %496 = vset.pattern.permute.xlu0 0
          %497 = vperm.xlu0 %496, %v479
          %v498 = vpop.permute.xlu0 %497
          %501 = vset.pattern.permute.xlu0 0
          %502 = vperm.xlu0 %501, %v480
          %v503 = vpop.permute.xlu0 %502
          %506 = vset.pattern.permute.xlu0 0
          %507 = vperm.xlu0 %506, %v481
          %v508 = vpop.permute.xlu0 %507
          %511 = vset.pattern.permute.xlu0 0
          %512 = vperm.xlu0 %511, %v482
          %v513 = vpop.permute.xlu0 %512
          %516 = vset.pattern.permute.xlu0 0
          %517 = vperm.xlu0 %516, %v483
          %v518 = vpop.permute.xlu0 %517
          %521 = vset.pattern.permute.xlu0 0
          %522 = vperm.xlu0 %521, %v484
          %v523 = vpop.permute.xlu0 %522
          %v525 = vmul.f32 %v469, %v488
          %v526 = vmul.f32 %v470, %v493
          %v527 = vmul.f32 %v471, %v498
          %v528 = vmul.f32 %v472, %v503
          %v529 = vmul.f32 %v473, %v508
          %v530 = vmul.f32 %v474, %v513
          %v531 = vmul.f32 %v475, %v518
          %v532 = vmul.f32 %v476, %v523
          %533 = vst [vmem:[%s221] sm:$0xff] %v525
          %534 = vst [vmem:[%s221 + $0x8] sm:$0xff] %v526
          %535 = vst [vmem:[%s221 + $0x10] sm:$0xff] %v527
          %536 = vst [vmem:[%s221 + $0x18] sm:$0xff] %v528
          %537 = vst [vmem:[%s221 + $0x20] sm:$0xff] %v529
          %538 = vst [vmem:[%s221 + $0x28] sm:$0xff] %v530
          %539 = vst [vmem:[%s221 + $0x30] sm:$0xff] %v531
          %540 = vst [vmem:[%s221 + $0x38] sm:$0xff] %v532
        $region44: #{tpu_custom_call.1} parent=31 // pred_fallthru
          _
        %s541 = sand.u32 %s115, 1
        %s542 = scalar_lea.sflag [#allocation4], %s541
        %s543 = sand.u32 %s115, 1
        %s544 = smul.addr %s543, 64
        %s545 = scalar_lea.vmem [#allocation5], %s544
        // Predicated region
        $region45: #{tpu_custom_call.1} parent=31 // pred_check
          %p546 = pneg %p125
        $region46: #{tpu_custom_call.1} parent=31 // pred_check_branch
          %548 = sbr.rel (%p546) target = $region48
        $region47: #{tpu_custom_call.1} parent=31 // pred_region
          %s549 = smul.u32 8, %s24
          %551 = vsyncadd %s542, 0
          %s552 = smul.addr %s549, 8
          %s553 = scalar_lea.hbm %s3, %s552
          %s554 = sshll.u32 %s545, 4
          %s555 = int_to_ptr.vmem [resolvable:$true] %s554
          %s556 = sshll.u32 %s553, 4
          %s557 = int_to_ptr.hbm [resolvable:$true] %s556
          %562 = dma.vmem_to_hbm [thread:$0]  %s555, 1024, %s557, %s542, 128, 128, 8
        $region48: #{tpu_custom_call.1} parent=31 // pred_fallthru
          _
      $region32: #{tpu_custom_call.1} parent=5 // pred_fallthru
        _
      %p563 = scmp.le.s32.totalorder 2, %s15
      // Predicated region
      $region49: #{tpu_custom_call.1} parent=5 // pred_check
        %p564 = pneg %p563
      $region50: #{tpu_custom_call.1} parent=5 // pred_check_branch
        %566 = sbr.rel (%p564) target = $region52
      $region51: #{tpu_custom_call.1} parent=5 // pred_region
        %s567 = ssub.s32 %s15, 2
        // Predicated region
        $region53: #{tpu_custom_call.1} parent=51 // pred_check
          %p568 = pneg %p131
        $region54: #{tpu_custom_call.1} parent=51 // pred_check_branch
          %570 = sbr.rel (%p568) target = $region56
        $region55: #{tpu_custom_call.1} parent=51 // pred_region
          %s571 = sand.u32 %s116, 1
          %s572 = scalar_lea.sflag [#allocation4], %s571
          %s573 = sand.u32 %s116, 1
          %s574 = smul.addr %s573, 64
          %s575 = scalar_lea.vmem [#allocation5], %s574
          %577 = dma.done %s572, 1024
        $region56: #{tpu_custom_call.1} parent=51 // pred_fallthru
          _
      $region52: #{tpu_custom_call.1} parent=5 // pred_fallthru
        _
    $region6: #{tpu_custom_call.1} parent=1 // loop_footer
      %s19 = sadd.s32 1, %s15
    $region7: #{tpu_custom_call.1} parent=1 // loop_footer_branch
      %14 = sbr.rel target = $region3
    $region8: #{tpu_custom_call.1} parent=1 // loop_exit
      _
    %578 = vsyncpa [#allocation3], 1
    %s579 = scalar_lea.sflag [#allocation3], 1
    %580 = vsyncpa %s579, 1
    %581 = vsyncpa [#allocation4], 1
    %s582 = scalar_lea.sflag [#allocation4], 1
    %583 = vsyncpa %s582, 1

</llo_original>
